<compile_context>
chip_gen: v6e
topology: v6e:2x2x1
jax: 0.10.0
libtpu: 0.0.40
codegen_flags: <defaults>
</compile_context>

<pallas_src>
import functools

import jax
import jax.numpy as jnp
from jax.experimental import pallas as pl
from jax.experimental.pallas import tpu as pltpu

BN_EPS = 1e-5


def private_encoder_kernel(patches_ref, w1_ref, b1_ref,
                           wd_ref, gamma_ref, beta_ref,
                           pos_ref, wm_ref, bm_ref, out_ref):
    N = patches_ref.shape[0]          # B * num_patches (static)
    P = pos_ref.shape[0]              # num_patches     (static)
    B = N // P                        # batch           (static)
    inv_n = 1.0 / N

    # ---- patch-embed conv (as matmul): bf16 x bf16 -> f32 accumulate, + ReLU
    h = jnp.dot(patches_ref[...], w1_ref[...],
                preferred_element_type=jnp.float32)
    h = jnp.maximum(h + b1_ref[...], 0.0)

    # ---- private_depth x (1x1 conv + BatchNorm2d(track_running_stats=False) + ReLU)
    # The conv bias is omitted: BN with batch statistics subtracts the
    # per-channel mean, which exactly cancels any per-channel constant bias.
    depth = wd_ref.shape[0]
    for d in range(depth):            # static, compile-time unrolled
        z = jnp.dot(h.astype(jnp.bfloat16), wd_ref[d],
                    preferred_element_type=jnp.float32)
        # single-pass batch statistics (biased variance, as PyTorch BN train mode)
        s = jnp.sum(z, axis=0, keepdims=True)
        ss = jnp.sum(z * z, axis=0, keepdims=True)
        mean = s * inv_n
        var = ss * inv_n - mean * mean
        # fold normalization + affine into one scale/shift (rsqrt -> EUP slot)
        scale = gamma_ref[d:d + 1, :] * jax.lax.rsqrt(var + BN_EPS)
        shift = beta_ref[d:d + 1, :] - mean * scale
        h = jnp.maximum(z * scale + shift, 0.0)

    # ---- + pos_embedding (replicated in-kernel across batch), ReLU, mixer Linear
    pos = pos_ref[...]
    pos_full = jnp.concatenate([pos] * B, axis=0) if B > 1 else pos
    h = jnp.maximum(h + pos_full, 0.0)
    out = jnp.dot(h.astype(jnp.bfloat16), wm_ref[...],
                  preferred_element_type=jnp.float32) + bm_ref[...]
    out_ref[...] = out.astype(out_ref.dtype)


def extract_patches(x, patch_size):
    """NCHW -> [B, num_patches, Cin*p*p], flattened in (Cin, kh, kw) order
    (matches PyTorch Conv2d weight [Cout, Cin, kh, kw].reshape(Cout, -1))."""
    B, Cin, Himg, Wimg = x.shape
    p = patch_size
    H, W = Himg // p, Wimg // p
    x = x.reshape(B, Cin, H, p, W, p)
    x = x.transpose(0, 2, 4, 1, 3, 5)          # [B, H, W, Cin, p, p]
    return x.reshape(B, H * W, Cin * p * p)


def private_encoder_forward(x, params, args, shuffle_key=None):
    B = x.shape[0]
    p = args.private_kernel_size
    Hg = args.img_size[0] // p
    P = Hg * Hg
    C = args.hidden_dim * params["width_factor"]
    hidden = args.hidden_dim
    D = args.private_depth

    # bf16 patches halve the input DMA bytes; accumulation inside stays f32.
    patches = extract_patches(x, p).reshape(B * P, -1).astype(jnp.bfloat16)
    pos = params["pos_embedding"].reshape(P, C).astype(jnp.float32)  # un-broadcast

    # NOTE: params["bd"] (1x1-conv bias) is not passed — it is exactly
    # cancelled by the batch-stats BatchNorm that follows each 1x1 conv.
    inputs = (patches,
              params["w1"], params["b1"],
              params["wd"], params["gamma"], params["beta"],
              pos, params["wm"], params["bm"])

    K = patches.shape[1]
    flops = 2 * B * P * (K * C + D * C * C + C * hidden)
    bytes_accessed = (sum(int(a.size) * a.dtype.itemsize for a in inputs)
                      + B * P * hidden * 4)
    cost = pl.CostEstimate(flops=flops,
                           transcendentals=D * C,
                           bytes_accessed=bytes_accessed)

    vmem = pl.BlockSpec(memory_space=pltpu.MemorySpace.VMEM)
    out = pl.pallas_call(
        private_encoder_kernel,
        out_shape=jax.ShapeDtypeStruct((B * P, hidden), jnp.float32),
        in_specs=[vmem] * len(inputs),
        out_specs=vmem,
        cost_estimate=cost,
    )(*inputs)

    encoded = out.reshape(B, P, hidden)

    # per-sample pixel shuffle (plain-JAX glue: random permutation gather)
    if (not args.remove_pixel_shuffle) and (not args.load_data_from_encoded_dir):
        if shuffle_key is None:
            shuffle_key = jax.random.PRNGKey(123)
        keys = jax.random.split(shuffle_key, B)
        perms = jax.vmap(functools.partial(jax.random.permutation, x=P))(keys)
        encoded = jnp.take_along_axis(encoded, perms[:, :, None], axis=1)
    return encoded


def init_params(key, args, width_factor=1):
    Cin = args.num_chan
    p = args.private_kernel_size
    C = args.hidden_dim * width_factor
    hidden = args.hidden_dim
    P = (args.img_size[0] // p) ** 2
    K = Cin * p * p
    D = args.private_depth

    ks = jax.random.split(key, 6)
    params = {
        "width_factor": width_factor,
        # patchify conv: PyTorch weight [C, Cin, p, p] -> matmul weight [K, C]
        # MXU weights stored in bf16 (halves DMA bytes; accumulation stays f32).
        "w1": (jax.random.normal(ks[0], (K, C), jnp.float32) * 0.05).astype(jnp.bfloat16),
        "b1": jnp.zeros((1, C), jnp.float32),
        # depth x 1x1 convs: [D, C, C] (already transposed to [in, out])
        "wd": (jax.random.normal(ks[1], (D, C, C), jnp.float32) * 0.05).astype(jnp.bfloat16),
        # kept for module fidelity; unused in forward (cancelled by BatchNorm)
        "bd": jax.random.normal(ks[2], (D, C), jnp.float32) * 0.01,
        "gamma": jnp.ones((D, C), jnp.float32),
        "beta": jnp.zeros((D, C), jnp.float32),
        "pos_embedding": jax.random.normal(ks[3], (1, P, C), jnp.float32),
        # mixer Linear(C, hidden): weight stored as [C, hidden]
        "wm": (jax.random.normal(ks[4], (C, hidden), jnp.float32) * 0.05).astype(jnp.bfloat16),
        "bm": jax.random.normal(ks[5], (1, hidden), jnp.float32) * 0.01,
    }
    return params


class Args:
    num_chan = 4
    private_kernel_size = 4
    hidden_dim = 32
    img_size = (16, 16)
    private_depth = 2
    remove_pixel_shuffle = False
    load_data_from_encoded_dir = False


if __name__ == "__main__":
    args = Args()
    key = jax.random.PRNGKey(0)
    k_param, k_x, k_shuffle = jax.random.split(key, 3)

    params = init_params(k_param, args, width_factor=1)

    B = 2
    x = jax.random.normal(k_x, (B, args.num_chan, *args.img_size), jnp.float32)

    out = private_encoder_forward(x, params, args, shuffle_key=k_shuffle)
    out = jax.block_until_ready(out)

    expected_patches = (args.img_size[0] // args.private_kernel_size) ** 2
    assert out.shape == (B, expected_patches, args.hidden_dim), out.shape
    assert jnp.all(jnp.isfinite(out))
    print("KERNEL_OK")
</pallas_src>

<mosaic_0001>
module attributes {stable_mosaic.version = 11 : i64} {
  func.func @private_encoder_kernel(%arg0: memref<32x64xbf16, #tpu.memory_space<vmem>>, %arg1: memref<64x32xbf16, #tpu.memory_space<vmem>>, %arg2: memref<1x32xf32, #tpu.memory_space<vmem>>, %arg3: memref<2x32x32xbf16, #tpu.memory_space<vmem>>, %arg4: memref<2x32xf32, #tpu.memory_space<vmem>>, %arg5: memref<2x32xf32, #tpu.memory_space<vmem>>, %arg6: memref<16x32xf32, #tpu.memory_space<vmem>>, %arg7: memref<32x32xbf16, #tpu.memory_space<vmem>>, %arg8: memref<1x32xf32, #tpu.memory_space<vmem>>, %arg9: memref<32x32xf32, #tpu.memory_space<vmem>>) attributes {dimension_semantics = [], scalar_prefetch = 0 : i64, scratch_operands = 0 : i64, tpu.core_type = #tpu.core_type<tc>} {
    %c0 = arith.constant 0 : index
    %c0_0 = arith.constant 0 : index
    %0 = vector.load %arg0[%c0, %c0_0] : memref<32x64xbf16, #tpu.memory_space<vmem>>, vector<32x64xbf16>
    %c0_1 = arith.constant 0 : index
    %c0_2 = arith.constant 0 : index
    %1 = vector.load %arg1[%c0_1, %c0_2] : memref<64x32xbf16, #tpu.memory_space<vmem>>, vector<64x32xbf16>
    %cst = arith.constant dense<0.000000e+00> : vector<32x32xf32>
    %2 = tpu.matmul %0, %1, %cst {dimension_numbers = #tpu.dot_dimension_numbers<[1], [0], [0], [1], [0, 0, 1, 1], [], []>} : vector<32x64xbf16>, vector<64x32xbf16>, vector<32x32xf32> -> vector<32x32xf32>
    %c0_3 = arith.constant 0 : index
    %c0_4 = arith.constant 0 : index
    %3 = vector.load %arg2[%c0_3, %c0_4] : memref<1x32xf32, #tpu.memory_space<vmem>>, vector<1x32xf32>
    %4 = vector.broadcast %3 : vector<1x32xf32> to vector<32x32xf32>
    %5 = arith.addf %2, %4 : vector<32x32xf32>
    %cst_5 = arith.constant 0.000000e+00 : f32
    %6 = vector.broadcast %cst_5 : f32 to vector<32x32xf32>
    %7 = arith.maximumf %5, %6 : vector<32x32xf32>
    %8 = arith.truncf %7 : vector<32x32xf32> to vector<32x32xbf16>
    %c0_6 = arith.constant 0 : index
    %c0_7 = arith.constant 0 : index
    %c0_8 = arith.constant 0 : index
    %9 = vector.load %arg3[%c0_6, %c0_7, %c0_8] : memref<2x32x32xbf16, #tpu.memory_space<vmem>>, vector<1x32x32xbf16>
    %10 = vector.shape_cast %9 : vector<1x32x32xbf16> to vector<32x32xbf16>
    %cst_9 = arith.constant dense<0.000000e+00> : vector<32x32xf32>
    %11 = tpu.matmul %8, %10, %cst_9 {dimension_numbers = #tpu.dot_dimension_numbers<[1], [0], [0], [1], [0, 0, 1, 1], [], []>} : vector<32x32xbf16>, vector<32x32xbf16>, vector<32x32xf32> -> vector<32x32xf32>
    %cst_10 = arith.constant dense<0.000000e+00> : vector<32xf32>
    %12 = vector.multi_reduction <add>, %11, %cst_10 [0] : vector<32x32xf32> to vector<32xf32>
    %13 = vector.shape_cast %12 : vector<32xf32> to vector<1x32xf32>
    %14 = arith.mulf %11, %11 : vector<32x32xf32>
    %cst_11 = arith.constant dense<0.000000e+00> : vector<32xf32>
    %15 = vector.multi_reduction <add>, %14, %cst_11 [0] : vector<32x32xf32> to vector<32xf32>
    %16 = vector.shape_cast %15 : vector<32xf32> to vector<1x32xf32>
    %cst_12 = arith.constant 3.125000e-02 : f32
    %17 = vector.broadcast %cst_12 : f32 to vector<1x32xf32>
    %18 = arith.mulf %13, %17 : vector<1x32xf32>
    %cst_13 = arith.constant 3.125000e-02 : f32
    %19 = vector.broadcast %cst_13 : f32 to vector<1x32xf32>
    %20 = arith.mulf %16, %19 : vector<1x32xf32>
    %21 = arith.mulf %18, %18 : vector<1x32xf32>
    %22 = arith.subf %20, %21 : vector<1x32xf32>
    %c0_14 = arith.constant 0 : index
    %c0_15 = arith.constant 0 : index
    %23 = vector.load %arg4[%c0_14, %c0_15] : memref<2x32xf32, #tpu.memory_space<vmem>>, vector<1x32xf32>
    %cst_16 = arith.constant 9.99999974E-6 : f32
    %24 = vector.broadcast %cst_16 : f32 to vector<1x32xf32>
    %25 = arith.addf %22, %24 : vector<1x32xf32>
    %26 = math.rsqrt %25 : vector<1x32xf32>
    %27 = arith.mulf %23, %26 : vector<1x32xf32>
    %c0_17 = arith.constant 0 : index
    %c0_18 = arith.constant 0 : index
    %28 = vector.load %arg5[%c0_17, %c0_18] : memref<2x32xf32, #tpu.memory_space<vmem>>, vector<1x32xf32>
    %29 = arith.mulf %18, %27 : vector<1x32xf32>
    %30 = arith.subf %28, %29 : vector<1x32xf32>
    %31 = vector.broadcast %27 : vector<1x32xf32> to vector<32x32xf32>
    %32 = arith.mulf %11, %31 : vector<32x32xf32>
    %33 = vector.broadcast %30 : vector<1x32xf32> to vector<32x32xf32>
    %34 = arith.addf %32, %33 : vector<32x32xf32>
    %cst_19 = arith.constant 0.000000e+00 : f32
    %35 = vector.broadcast %cst_19 : f32 to vector<32x32xf32>
    %36 = arith.maximumf %34, %35 : vector<32x32xf32>
    %37 = arith.truncf %36 : vector<32x32xf32> to vector<32x32xbf16>
    %c1 = arith.constant 1 : index
    %c0_20 = arith.constant 0 : index
    %c0_21 = arith.constant 0 : index
    %38 = vector.load %arg3[%c1, %c0_20, %c0_21] : memref<2x32x32xbf16, #tpu.memory_space<vmem>>, vector<1x32x32xbf16>
    %39 = vector.shape_cast %38 : vector<1x32x32xbf16> to vector<32x32xbf16>
    %cst_22 = arith.constant dense<0.000000e+00> : vector<32x32xf32>
    %40 = tpu.matmul %37, %39, %cst_22 {dimension_numbers = #tpu.dot_dimension_numbers<[1], [0], [0], [1], [0, 0, 1, 1], [], []>} : vector<32x32xbf16>, vector<32x32xbf16>, vector<32x32xf32> -> vector<32x32xf32>
    %cst_23 = arith.constant dense<0.000000e+00> : vector<32xf32>
    %41 = vector.multi_reduction <add>, %40, %cst_23 [0] : vector<32x32xf32> to vector<32xf32>
    %42 = vector.shape_cast %41 : vector<32xf32> to vector<1x32xf32>
    %43 = arith.mulf %40, %40 : vector<32x32xf32>
    %cst_24 = arith.constant dense<0.000000e+00> : vector<32xf32>
    %44 = vector.multi_reduction <add>, %43, %cst_24 [0] : vector<32x32xf32> to vector<32xf32>
    %45 = vector.shape_cast %44 : vector<32xf32> to vector<1x32xf32>
    %cst_25 = arith.constant 3.125000e-02 : f32
    %46 = vector.broadcast %cst_25 : f32 to vector<1x32xf32>
    %47 = arith.mulf %42, %46 : vector<1x32xf32>
    %cst_26 = arith.constant 3.125000e-02 : f32
    %48 = vector.broadcast %cst_26 : f32 to vector<1x32xf32>
    %49 = arith.mulf %45, %48 : vector<1x32xf32>
    %50 = arith.mulf %47, %47 : vector<1x32xf32>
    %51 = arith.subf %49, %50 : vector<1x32xf32>
    %c1_27 = arith.constant 1 : index
    %c0_28 = arith.constant 0 : index
    %52 = vector.load %arg4[%c1_27, %c0_28] : memref<2x32xf32, #tpu.memory_space<vmem>>, vector<1x32xf32>
    %cst_29 = arith.constant 9.99999974E-6 : f32
    %53 = vector.broadcast %cst_29 : f32 to vector<1x32xf32>
    %54 = arith.addf %51, %53 : vector<1x32xf32>
    %55 = math.rsqrt %54 : vector<1x32xf32>
    %56 = arith.mulf %52, %55 : vector<1x32xf32>
    %c1_30 = arith.constant 1 : index
    %c0_31 = arith.constant 0 : index
    %57 = vector.load %arg5[%c1_30, %c0_31] : memref<2x32xf32, #tpu.memory_space<vmem>>, vector<1x32xf32>
    %58 = arith.mulf %47, %56 : vector<1x32xf32>
    %59 = arith.subf %57, %58 : vector<1x32xf32>
    %60 = vector.broadcast %56 : vector<1x32xf32> to vector<32x32xf32>
    %61 = arith.mulf %40, %60 : vector<32x32xf32>
    %62 = vector.broadcast %59 : vector<1x32xf32> to vector<32x32xf32>
    %63 = arith.addf %61, %62 : vector<32x32xf32>
    %cst_32 = arith.constant 0.000000e+00 : f32
    %64 = vector.broadcast %cst_32 : f32 to vector<32x32xf32>
    %65 = arith.maximumf %63, %64 : vector<32x32xf32>
    %c0_33 = arith.constant 0 : index
    %c0_34 = arith.constant 0 : index
    %66 = vector.load %arg6[%c0_33, %c0_34] : memref<16x32xf32, #tpu.memory_space<vmem>>, vector<16x32xf32>
    %67 = tpu.concatenate %66, %66 in 0 : vector<16x32xf32>, vector<16x32xf32> -> vector<32x32xf32>
    %68 = arith.addf %65, %67 : vector<32x32xf32>
    %cst_35 = arith.constant 0.000000e+00 : f32
    %69 = vector.broadcast %cst_35 : f32 to vector<32x32xf32>
    %70 = arith.maximumf %68, %69 : vector<32x32xf32>
    %71 = arith.truncf %70 : vector<32x32xf32> to vector<32x32xbf16>
    %c0_36 = arith.constant 0 : index
    %c0_37 = arith.constant 0 : index
    %72 = vector.load %arg7[%c0_36, %c0_37] : memref<32x32xbf16, #tpu.memory_space<vmem>>, vector<32x32xbf16>
    %cst_38 = arith.constant dense<0.000000e+00> : vector<32x32xf32>
    %73 = tpu.matmul %71, %72, %cst_38 {dimension_numbers = #tpu.dot_dimension_numbers<[1], [0], [0], [1], [0, 0, 1, 1], [], []>} : vector<32x32xbf16>, vector<32x32xbf16>, vector<32x32xf32> -> vector<32x32xf32>
    %c0_39 = arith.constant 0 : index
    %c0_40 = arith.constant 0 : index
    %74 = vector.load %arg8[%c0_39, %c0_40] : memref<1x32xf32, #tpu.memory_space<vmem>>, vector<1x32xf32>
    %75 = vector.broadcast %74 : vector<1x32xf32> to vector<32x32xf32>
    %76 = arith.addf %73, %75 : vector<32x32xf32>
    %c0_41 = arith.constant 0 : index
    %c0_42 = arith.constant 0 : index
    %77 = vector.load %arg9[%c0_41, %c0_42] : memref<32x32xf32, #tpu.memory_space<vmem>>, vector<32x32xf32>
    tpu.vector_store %arg9[%c0_41, %c0_42], %76 {strides = array<i32>} : memref<32x32xf32, #tpu.memory_space<vmem>>, vector<32x32xf32>,
    return
  }
}

</mosaic_0001>

<llo_original>
// kernel: tpu_custom_call.1
$region0: #{tpu_custom_call.1}
  #allocation0 [shape = 'u32[]', space=smem, size = 0x4, offset = 0x4, fixed_abs, tag = 'smem constant byte address 0x4 - core index']
  #allocation1 [shape = 'u32[144,128]{1,0:T(1,128)}', space=vmem, size = 0x12000, scoped, tag = 'internal scratch']
  %s0 = inlined_call_operand.vmem [shape: bf16[32,64], index: 0, kind: input, shape index: {}]
  %s1 = inlined_call_operand.vmem [shape: bf16[64,32], index: 1, kind: input, shape index: {}]
  %s2 = inlined_call_operand.vmem [shape: f32[1,32], index: 2, kind: input, shape index: {}]
  %s3 = inlined_call_operand.vmem [shape: bf16[2,32,32], index: 3, kind: input, shape index: {}]
  %s4 = inlined_call_operand.vmem [shape: f32[2,32], index: 4, kind: input, shape index: {}]
  %s5 = inlined_call_operand.vmem [shape: f32[2,32], index: 5, kind: input, shape index: {}]
  %s6 = inlined_call_operand.hbm [shape: f32[16,32], index: 6, kind: input, shape index: {}]
  %s7 = inlined_call_operand.hbm [shape: bf16[32,32], index: 7, kind: input, shape index: {}]
  %s8 = inlined_call_operand.vmem [shape: f32[1,32], index: 8, kind: input, shape index: {}]
  %s9 = inlined_call_operand.hbm [shape: f32[32,32], index: 9, kind: output, shape index: {}]
  %s10 = sld [smem:[#allocation0]]
  $region54: #{tpu_custom_call.1} parent=0
    _
  %s12 = ssub.s32 1, %s10
  %s13 = scalar_select 0, %s12, %s10
  $region1: #{tpu_custom_call.1} parent=0
    #allocation2 [shape = 'u8[8192]{0}', space=vmem, size = 0x2000, scoped, tag = 'input window, operand 6, single buffered']
    #allocation3 [shape = 's32[1]{0}', space=sflag, size = 0x4, scoped, tag = 'scoped memory for tpu_custom_call.1']
    #allocation4 [shape = 's32[1]{0}', space=sflag, size = 0x4, scoped, tag = 'scoped memory for tpu_custom_call.1']
    #allocation5 [shape = 'u8[8192]{0}', space=vmem, size = 0x2000, scoped, tag = 'input window, operand 7, single buffered']
    #allocation6 [shape = 's32[1]{0}', space=sflag, size = 0x4, scoped, tag = 'scoped memory for tpu_custom_call.1']
    #allocation7 [shape = 'u8[16384]{0}', space=vmem, size = 0x4000, scoped, tag = 'output window, operand 0, single buffered']
    %14 = vsyncpa [#allocation3], 0
    %15 = vsyncpa [#allocation6], 0
    %16 = vsyncpa [#allocation4], 0
    // Predicated region
    $region2: #{tpu_custom_call.1} parent=1 // pred_check
      _
    $region3: #{tpu_custom_call.1} parent=1 // pred_check_branch
      %18 = sbr.rel (0) target = $region5
    $region4: #{tpu_custom_call.1} parent=1 // pred_region
      _
    $region5: #{tpu_custom_call.1} parent=1 // pred_fallthru
      _
    // Predicated region
    $region6: #{tpu_custom_call.1} parent=1 // pred_check
      _
    $region7: #{tpu_custom_call.1} parent=1 // pred_check_branch
      %20 = sbr.rel (0) target = $region9
    $region8: #{tpu_custom_call.1} parent=1 // pred_region
      _
    $region9: #{tpu_custom_call.1} parent=1 // pred_fallthru
      _
    // Predicated region
    $region10: #{tpu_custom_call.1} parent=1 // pred_check
      _
    $region11: #{tpu_custom_call.1} parent=1 // pred_check_branch
      %22 = sbr.rel (0) target = $region13
    $region12: #{tpu_custom_call.1} parent=1 // pred_region
      _
    $region13: #{tpu_custom_call.1} parent=1 // pred_fallthru
      _
    // Predicated region
    $region14: #{tpu_custom_call.1} parent=1 // pred_check
      _
    $region15: #{tpu_custom_call.1} parent=1 // pred_check_branch
      %24 = sbr.rel (0) target = $region17
    $region16: #{tpu_custom_call.1} parent=1 // pred_region
      _
    $region17: #{tpu_custom_call.1} parent=1 // pred_fallthru
      _
    // Predicated region
    $region18: #{tpu_custom_call.1} parent=1 // pred_check
      _
    $region19: #{tpu_custom_call.1} parent=1 // pred_check_branch
      %26 = sbr.rel (0) target = $region21
    $region20: #{tpu_custom_call.1} parent=1 // pred_region
      _
    $region21: #{tpu_custom_call.1} parent=1 // pred_fallthru
      _
    // Predicated region
    $region22: #{tpu_custom_call.1} parent=1 // pred_check
      _
    $region23: #{tpu_custom_call.1} parent=1 // pred_check_branch
      %28 = sbr.rel (0) target = $region25
    $region24: #{tpu_custom_call.1} parent=1 // pred_region
      _
    $region25: #{tpu_custom_call.1} parent=1 // pred_fallthru
      _
    // Predicated region
    $region26: #{tpu_custom_call.1} parent=1 // pred_check
      _
    $region27: #{tpu_custom_call.1} parent=1 // pred_check_branch
      %30 = sbr.rel (0) target = $region29
    $region28: #{tpu_custom_call.1} parent=1 // pred_region
      %s32 = ssub.s32 256, 256
      %33 = vsyncadd [#allocation3], %s32
      %s34 = sshll.u32 [#allocation2], 4
      %s35 = int_to_ptr.vmem [resolvable:$true] %s34
      %40 = dma.hbm_to_vmem [thread:$0]  %s6, 256, %s35, [#allocation3], 128, 128, 8
    $region29: #{tpu_custom_call.1} parent=1 // pred_fallthru
      _
    // Predicated region
    $region30: #{tpu_custom_call.1} parent=1 // pred_check
      _
    $region31: #{tpu_custom_call.1} parent=1 // pred_check_branch
      %42 = sbr.rel (0) target = $region33
    $region32: #{tpu_custom_call.1} parent=1 // pred_region
      %s44 = ssub.s32 256, 256
      %45 = vsyncadd [#allocation6], %s44
      %s46 = sshll.u32 [#allocation5], 4
      %s47 = int_to_ptr.vmem [resolvable:$true] %s46
      %52 = dma.hbm_to_vmem [thread:$0]  %s7, 256, %s47, [#allocation6], 64, 64, 4
    $region33: #{tpu_custom_call.1} parent=1 // pred_fallthru
      _
    // Predicated region
    $region34: #{tpu_custom_call.1} parent=1 // pred_check
      _
    $region35: #{tpu_custom_call.1} parent=1 // pred_check_branch
      %54 = sbr.rel (0) target = $region37
    $region36: #{tpu_custom_call.1} parent=1 // pred_region
      _
    $region37: #{tpu_custom_call.1} parent=1 // pred_fallthru
      _
    // Predicated region
    $region38: #{tpu_custom_call.1} parent=1 // pred_check
      _
    $region39: #{tpu_custom_call.1} parent=1 // pred_check_branch
      %56 = sbr.rel (0) target = $region41
    $region40: #{tpu_custom_call.1} parent=1 // pred_region
      %57 = dma.done [#allocation3], 256
    $region41: #{tpu_custom_call.1} parent=1 // pred_fallthru
      _
    // Predicated region
    $region42: #{tpu_custom_call.1} parent=1 // pred_check
      _
    $region43: #{tpu_custom_call.1} parent=1 // pred_check_branch
      %59 = sbr.rel (0) target = $region45
    $region44: #{tpu_custom_call.1} parent=1 // pred_region
      %60 = dma.done [#allocation6], 256
    $region45: #{tpu_custom_call.1} parent=1 // pred_fallthru
      _
    %v62 = vld [vmem:[%s0] sm:$0xf]
    %v63 = vld [vmem:[%s0 + $0x4] sm:$0xf]
    %v64 = vld [vmem:[%s0 + $0x8] sm:$0xf]
    %v65 = vld [vmem:[%s0 + $0xc] sm:$0xf]
    %v66 = vld [vmem:[%s1] sm:$0xf]
    %v67 = vld [vmem:[%s1 + $0x4] sm:$0xf]
    %v68 = vld [vmem:[%s1 + $0x8] sm:$0xf]
    %v69 = vld [vmem:[%s1 + $0xc] sm:$0xf]
    %v70 = vld [vmem:[%s1 + $0x10] sm:$0xf]
    %v71 = vld [vmem:[%s1 + $0x14] sm:$0xf]
    %v72 = vld [vmem:[%s1 + $0x18] sm:$0xf]
    %v73 = vld [vmem:[%s1 + $0x1c] sm:$0xf]
    %v74 = vld [vmem:[%s2] sm:$0x1]
    %v76 = vlaneseq
    %v77 = vshrl.u32 %v76, 7
    %v78 = vsub.s32 0, %v77
    %v79 = vrot.slane %v74, %v78
    %v85 = vunpack.c.l.b16 %v62
    %v86 = vunpack.c.l.b16 %v63
    %v87 = vunpack.c.l.b16 %v64
    %v88 = vunpack.c.l.b16 %v65
    %v89 = vpack.c.b16 %v86, %v85
    %v90 = vpack.c.b16 %v88, %v87
    %v99 = vunpack.c.l.b16 %v66
    %v100 = vunpack.c.l.b16 %v67
    %v101 = vunpack.c.l.b16 %v68
    %v102 = vunpack.c.l.b16 %v69
    %v103 = vunpack.c.l.b16 %v70
    %v104 = vunpack.c.l.b16 %v71
    %v105 = vunpack.c.l.b16 %v72
    %v106 = vunpack.c.l.b16 %v73
    %v107 = vpack.c.b16 %v100, %v99
    %v108 = vpack.c.b16 %v102, %v101
    %v109 = vpack.c.b16 %v104, %v103
    %v110 = vpack.c.b16 %v106, %v105
    %vm115 = vcmask 523264
    %v117 = vsel %vm115, %v89, 0
    %v120 = vsel %vm115, %v90, 0
    %122 = vmatprep.subr.bf16.mxu0 0
    %123 = vmatpush1.bf16.msra.mxu0 0
    %124 = vmatprep.subr.bf16.mxu0 0
    %125 = vmatpush1.bf16.msra.mxu0 0
    %126 = vmatprep.subr.bf16.mxu0 0
    %127 = vmatpush1.bf16.msra.mxu0 0
    %128 = vmatprep.subr.bf16.mxu0 0
    %129 = vmatpush1.bf16.msra.mxu0 0
    %130 = vmatprep.subr.bf16.mxu0 0
    %131 = vmatpush1.bf16.msra.mxu0 %v110
    %132 = vmatprep.subr.bf16.mxu0 0
    %133 = vmatpush1.bf16.msra.mxu0 %v109
    %134 = vmatprep.subr.bf16.mxu0 0
    %135 = vmatpush1.bf16.msra.mxu0 %v108
    %136 = vmatprep.subr.bf16.mxu0 0
    %137 = vmatpush1.bf16.msra.mxu0 %v107
    %138 = vmatprep.subr.bf16.mxu0 0
    %139 = vmatpush2.bf16.msra.mxu0 0
    %140 = vmatprep.subr.bf16.mxu0 0
    %141 = vmatpush2.bf16.msra.mxu0 0
    %142 = vmatprep.subr.bf16.mxu0 0
    %143 = vmatpush2.bf16.msra.mxu0 0
    %144 = vmatprep.subr.bf16.mxu0 0
    %145 = vmatpush2.bf16.msra.mxu0 0
    %146 = vmatprep.subr.bf16.mxu0 0
    %147 = vmatpush2.bf16.msra.mxu0 0
    %148 = vmatprep.subr.bf16.mxu0 0
    %149 = vmatpush2.bf16.msra.mxu0 0
    %150 = vmatprep.subr.bf16.mxu0 0
    %151 = vmatpush2.bf16.msra.mxu0 0
    %152 = vmatprep.subr.bf16.mxu0 0
    %153 = vmatpush2.bf16.msra.mxu0 0
    %154 = vmatprep.mubr.bf16.mxu0 0
    %155 = vmatmul.mubr.bf16.gmra.mxu0 %v117
    %v156 = vpop.f32.mrf.mxu0
    %v157 = vadd.f32 %v79, %v156
    %v158 = vpop.f32.mrf.mxu0
    %v159 = vpop.f32.mrf.mxu0
    %v160 = vadd.f32 %v79, %v159
    %v161 = vpop.f32.mrf.mxu0
    %162 = vmatprep.mubr.bf16.mxu0 0
    %163 = vmatmul.mubr.bf16.gmra.mxu0 %v120
    %v164 = vpop.f32.mrf.mxu0
    %v165 = vadd.f32 %v79, %v164
    %v166 = vpop.f32.mrf.mxu0
    %v167 = vpop.f32.mrf.mxu0
    %v168 = vadd.f32 %v79, %v167
    %v169 = vpop.f32.mrf.mxu0
    %170 = vdwg.mxu0
    %v171 = vmax.f32 %v157, 0.0
    %v172 = vmax.f32 %v160, 0.0
    %v173 = vmax.f32 %v165, 0.0
    %v174 = vmax.f32 %v168, 0.0
    %v175 = vpack.c.bf16 %v172, %v171
    %v176 = vpack.c.bf16 %v174, %v173
    %v177 = vld [vmem:[%s3] sm:$0xf]
    %v178 = vld [vmem:[%s3 + $0x4] sm:$0xf]
    %v179 = vld [vmem:[%s3 + $0x8] sm:$0xf]
    %v180 = vld [vmem:[%s3 + $0xc] sm:$0xf]
    %v185 = vunpack.c.l.b16 %v177
    %v186 = vunpack.c.l.b16 %v178
    %v187 = vunpack.c.l.b16 %v179
    %v188 = vunpack.c.l.b16 %v180
    %v189 = vpack.c.b16 %v186, %v185
    %v190 = vpack.c.b16 %v188, %v187
    %vm193 = vcmask 261120
    %v195 = vsel %vm193, %v175, 0
    %v198 = vsel %vm193, %v176, 0
    %200 = vmatprep.subr.bf16.mxu0 0
    %201 = vmatpush1.bf16.msra.mxu0 0
    %202 = vmatprep.subr.bf16.mxu0 0
    %203 = vmatpush1.bf16.msra.mxu0 0
    %204 = vmatprep.subr.bf16.mxu0 0
    %205 = vmatpush1.bf16.msra.mxu0 0
    %206 = vmatprep.subr.bf16.mxu0 0
    %207 = vmatpush1.bf16.msra.mxu0 0
    %208 = vmatprep.subr.bf16.mxu0 0
    %209 = vmatpush1.bf16.msra.mxu0 0
    %210 = vmatprep.subr.bf16.mxu0 0
    %211 = vmatpush1.bf16.msra.mxu0 0
    %212 = vmatprep.subr.bf16.mxu0 0
    %213 = vmatpush1.bf16.msra.mxu0 %v190
    %214 = vmatprep.subr.bf16.mxu0 0
    %215 = vmatpush1.bf16.msra.mxu0 %v189
    %216 = vmatprep.subr.bf16.mxu0 0
    %217 = vmatpush2.bf16.msra.mxu0 0
    %218 = vmatprep.subr.bf16.mxu0 0
    %219 = vmatpush2.bf16.msra.mxu0 0
    %220 = vmatprep.subr.bf16.mxu0 0
    %221 = vmatpush2.bf16.msra.mxu0 0
    %222 = vmatprep.subr.bf16.mxu0 0
    %223 = vmatpush2.bf16.msra.mxu0 0
    %224 = vmatprep.subr.bf16.mxu0 0
    %225 = vmatpush2.bf16.msra.mxu0 0
    %226 = vmatprep.subr.bf16.mxu0 0
    %227 = vmatpush2.bf16.msra.mxu0 0
    %228 = vmatprep.subr.bf16.mxu0 0
    %229 = vmatpush2.bf16.msra.mxu0 0
    %230 = vmatprep.subr.bf16.mxu0 0
    %231 = vmatpush2.bf16.msra.mxu0 0
    %232 = vmatprep.mubr.bf16.mxu0 0
    %233 = vmatmul.mubr.bf16.gmra.mxu0 %v195
    %v234 = vpop.f32.mrf.mxu0
    %v235 = vadd.f32 0.0, %v234
    %v236 = vpop.f32.mrf.mxu0
    %v237 = vpop.f32.mrf.mxu0
    %v238 = vadd.f32 0.0, %v237
    %v239 = vpop.f32.mrf.mxu0
    %240 = vmatprep.mubr.bf16.mxu0 0
    %241 = vmatmul.mubr.bf16.gmra.mxu0 %v198
    %v242 = vpop.f32.mrf.mxu0
    %v243 = vadd.f32 0.0, %v242
    %v244 = vpop.f32.mrf.mxu0
    %v245 = vpop.f32.mrf.mxu0
    %v246 = vadd.f32 0.0, %v245
    %v247 = vpop.f32.mrf.mxu0
    %248 = vdwg.mxu0
    %v249 = vsel %vm193, %v235, 0.0
    %v250 = vsel %vm193, %v238, 0.0
    %v251 = vadd.f32 %v249, %v250
    %v252 = vsel %vm193, %v243, 0.0
    %v253 = vadd.f32 %v251, %v252
    %v254 = vsel %vm193, %v246, 0.0
    %v255 = vadd.f32 %v253, %v254
    %v256 = vrot.slane %v255, 4
    %v257 = vadd.f32 %v255, %v256
    %v258 = vrot.slane %v257, 2
    %v259 = vadd.f32 %v257, %v258
    %v260 = vrot.slane %v259, 1
    %v261 = vadd.f32 %v259, %v260
    %v262 = vmul.f32 %v235, %v235
    %v263 = vmul.f32 %v238, %v238
    %v264 = vmul.f32 %v243, %v243
    %v265 = vmul.f32 %v246, %v246
    %v266 = vsel %vm193, %v262, 0.0
    %v267 = vsel %vm193, %v263, 0.0
    %v268 = vadd.f32 %v266, %v267
    %v269 = vsel %vm193, %v264, 0.0
    %v270 = vadd.f32 %v268, %v269
    %v271 = vsel %vm193, %v265, 0.0
    %v272 = vadd.f32 %v270, %v271
    %v273 = vrot.slane %v272, 4
    %v274 = vadd.f32 %v272, %v273
    %v275 = vrot.slane %v274, 2
    %v276 = vadd.f32 %v274, %v275
    %v277 = vrot.slane %v276, 1
    %v278 = vadd.f32 %v276, %v277
    %v279 = vmul.f32 %v261, 0.03125
    %v280 = vmul.f32 %v278, 0.03125
    %v281 = vmul.f32 %v279, %v279
    %v282 = vsub.f32 %v280, %v281
    %v283 = vld [vmem:[%s4] sm:$0x1]
    %v284 = vadd.f32 %v282, 1e-05
    %v285 = vrsqrt.pop %v284
    %v286 = vmul.f32 %v283, %v285
    %v287 = vld [vmem:[%s5] sm:$0x1]
    %v288 = vmul.f32 %v279, %v286
    %v289 = vsub.f32 %v287, %v288
    %v290 = vlaneseq
    %v291 = vshrl.u32 %v290, 7
    %v292 = vsub.s32 0, %v291
    %v293 = vrot.slane %v286, %v292
    %v294 = vmul.f32 %v235, %v293
    %v295 = vmul.f32 %v238, %v293
    %v296 = vmul.f32 %v243, %v293
    %v297 = vmul.f32 %v246, %v293
    %v298 = vlaneseq
    %v299 = vshrl.u32 %v298, 7
    %v300 = vsub.s32 0, %v299
    %v301 = vrot.slane %v289, %v300
    %v302 = vadd.f32 %v294, %v301
    %v303 = vadd.f32 %v295, %v301
    %v304 = vadd.f32 %v296, %v301
    %v305 = vadd.f32 %v297, %v301
    %v306 = vmax.f32 %v302, 0.0
    %v307 = vmax.f32 %v303, 0.0
    %v308 = vmax.f32 %v304, 0.0
    %v309 = vmax.f32 %v305, 0.0
    %v310 = vpack.c.bf16 %v307, %v306
    %v311 = vpack.c.bf16 %v309, %v308
    %s312 = scalar_lea.vmem %s3, 16
    %v313 = vld [vmem:[%s312] sm:$0xf]
    %v314 = vld [vmem:[%s312 + $0x4] sm:$0xf]
    %v315 = vld [vmem:[%s312 + $0x8] sm:$0xf]
    %v316 = vld [vmem:[%s312 + $0xc] sm:$0xf]
    %v321 = vunpack.c.l.b16 %v313
    %v322 = vunpack.c.l.b16 %v314
    %v323 = vunpack.c.l.b16 %v315
    %v324 = vunpack.c.l.b16 %v316
    %v325 = vpack.c.b16 %v322, %v321
    %v326 = vpack.c.b16 %v324, %v323
    %v330 = vsel %vm193, %v310, 0
    %v333 = vsel %vm193, %v311, 0
    %335 = vmatprep.subr.bf16.mxu0 0
    %336 = vmatpush1.bf16.msra.mxu0 0
    %337 = vmatprep.subr.bf16.mxu0 0
    %338 = vmatpush1.bf16.msra.mxu0 0
    %339 = vmatprep.subr.bf16.mxu0 0
    %340 = vmatpush1.bf16.msra.mxu0 0
    %341 = vmatprep.subr.bf16.mxu0 0
    %342 = vmatpush1.bf16.msra.mxu0 0
    %343 = vmatprep.subr.bf16.mxu0 0
    %344 = vmatpush1.bf16.msra.mxu0 0
    %345 = vmatprep.subr.bf16.mxu0 0
    %346 = vmatpush1.bf16.msra.mxu0 0
    %347 = vmatprep.subr.bf16.mxu0 0
    %348 = vmatpush1.bf16.msra.mxu0 %v326
    %349 = vmatprep.subr.bf16.mxu0 0
    %350 = vmatpush1.bf16.msra.mxu0 %v325
    %351 = vmatprep.subr.bf16.mxu0 0
    %352 = vmatpush2.bf16.msra.mxu0 0
    %353 = vmatprep.subr.bf16.mxu0 0
    %354 = vmatpush2.bf16.msra.mxu0 0
    %355 = vmatprep.subr.bf16.mxu0 0
    %356 = vmatpush2.bf16.msra.mxu0 0
    %357 = vmatprep.subr.bf16.mxu0 0
    %358 = vmatpush2.bf16.msra.mxu0 0
    %359 = vmatprep.subr.bf16.mxu0 0
    %360 = vmatpush2.bf16.msra.mxu0 0
    %361 = vmatprep.subr.bf16.mxu0 0
    %362 = vmatpush2.bf16.msra.mxu0 0
    %363 = vmatprep.subr.bf16.mxu0 0
    %364 = vmatpush2.bf16.msra.mxu0 0
    %365 = vmatprep.subr.bf16.mxu0 0
    %366 = vmatpush2.bf16.msra.mxu0 0
    %367 = vmatprep.mubr.bf16.mxu0 0
    %368 = vmatmul.mubr.bf16.gmra.mxu0 %v330
    %v369 = vpop.f32.mrf.mxu0
    %v370 = vadd.f32 0.0, %v369
    %v371 = vpop.f32.mrf.mxu0
    %v372 = vpop.f32.mrf.mxu0
    %v373 = vadd.f32 0.0, %v372
    %v374 = vpop.f32.mrf.mxu0
    %375 = vmatprep.mubr.bf16.mxu0 0
    %376 = vmatmul.mubr.bf16.gmra.mxu0 %v333
    %v377 = vpop.f32.mrf.mxu0
    %v378 = vadd.f32 0.0, %v377
    %v379 = vpop.f32.mrf.mxu0
    %v380 = vpop.f32.mrf.mxu0
    %v381 = vadd.f32 0.0, %v380
    %v382 = vpop.f32.mrf.mxu0
    %383 = vdwg.mxu0
    %v384 = vsel %vm193, %v370, 0.0
    %v385 = vsel %vm193, %v373, 0.0
    %v386 = vadd.f32 %v384, %v385
    %v387 = vsel %vm193, %v378, 0.0
    %v388 = vadd.f32 %v386, %v387
    %v389 = vsel %vm193, %v381, 0.0
    %v390 = vadd.f32 %v388, %v389
    %v391 = vrot.slane %v390, 4
    %v392 = vadd.f32 %v390, %v391
    %v393 = vrot.slane %v392, 2
    %v394 = vadd.f32 %v392, %v393
    %v395 = vrot.slane %v394, 1
    %v396 = vadd.f32 %v394, %v395
    %v397 = vmul.f32 %v370, %v370
    %v398 = vmul.f32 %v373, %v373
    %v399 = vmul.f32 %v378, %v378
    %v400 = vmul.f32 %v381, %v381
    %v401 = vsel %vm193, %v397, 0.0
    %v402 = vsel %vm193, %v398, 0.0
    %v403 = vadd.f32 %v401, %v402
    %v404 = vsel %vm193, %v399, 0.0
    %v405 = vadd.f32 %v403, %v404
    %v406 = vsel %vm193, %v400, 0.0
    %v407 = vadd.f32 %v405, %v406
    %v408 = vrot.slane %v407, 4
    %v409 = vadd.f32 %v407, %v408
    %v410 = vrot.slane %v409, 2
    %v411 = vadd.f32 %v409, %v410
    %v412 = vrot.slane %v411, 1
    %v413 = vadd.f32 %v411, %v412
    %v414 = vmul.f32 %v396, 0.03125
    %v415 = vmul.f32 %v413, 0.03125
    %v416 = vmul.f32 %v414, %v414
    %v417 = vsub.f32 %v415, %v416
    %v418 = vld [vmem:[%s4 + $0x1] sm:$0x1]
    %v419 = vadd.f32 %v417, 1e-05
    %v420 = vrsqrt.pop %v419
    %v421 = vmul.f32 %v418, %v420
    %v422 = vld [vmem:[%s5 + $0x1] sm:$0x1]
    %v423 = vmul.f32 %v414, %v421
    %v424 = vsub.f32 %v422, %v423
    %v425 = vlaneseq
    %v426 = vshrl.u32 %v425, 7
    %v427 = vsub.s32 0, %v426
    %v428 = vrot.slane %v421, %v427
    %v429 = vmul.f32 %v370, %v428
    %v430 = vmul.f32 %v373, %v428
    %v431 = vmul.f32 %v378, %v428
    %v432 = vmul.f32 %v381, %v428
    %v433 = vlaneseq
    %v434 = vshrl.u32 %v433, 7
    %v435 = vsub.s32 0, %v434
    %v436 = vrot.slane %v424, %v435
    %v437 = vadd.f32 %v429, %v436
    %v438 = vadd.f32 %v430, %v436
    %v439 = vadd.f32 %v431, %v436
    %v440 = vadd.f32 %v432, %v436
    %v441 = vmax.f32 %v437, 0.0
    %v442 = vmax.f32 %v438, 0.0
    %v443 = vmax.f32 %v439, 0.0
    %v444 = vmax.f32 %v440, 0.0
    %v445 = vld [vmem:[#allocation2] sm:$0xff]
    %v446 = vld [vmem:[#allocation2 + $0x8] sm:$0xff]
    %v447 = vadd.f32 %v441, %v445
    %v448 = vadd.f32 %v442, %v446
    %v449 = vadd.f32 %v443, %v445
    %v450 = vadd.f32 %v444, %v446
    %v451 = vmax.f32 %v447, 0.0
    %v452 = vmax.f32 %v448, 0.0
    %v453 = vmax.f32 %v449, 0.0
    %v454 = vmax.f32 %v450, 0.0
    %v455 = vpack.c.bf16 %v452, %v451
    %v456 = vpack.c.bf16 %v454, %v453
    %v457 = vld [vmem:[#allocation5] sm:$0xf]
    %v458 = vld [vmem:[#allocation5 + $0x4] sm:$0xf]
    %v459 = vld [vmem:[#allocation5 + $0x8] sm:$0xf]
    %v460 = vld [vmem:[#allocation5 + $0xc] sm:$0xf]
    %v461 = vld [vmem:[%s8] sm:$0x1]
    %v463 = vlaneseq
    %v464 = vshrl.u32 %v463, 7
    %v465 = vsub.s32 0, %v464
    %v466 = vrot.slane %v461, %v465
    %v472 = vunpack.c.l.b16 %v457
    %v473 = vunpack.c.l.b16 %v458
    %v474 = vunpack.c.l.b16 %v459
    %v475 = vunpack.c.l.b16 %v460
    %v476 = vpack.c.b16 %v473, %v472
    %v477 = vpack.c.b16 %v475, %v474
    %v481 = vsel %vm193, %v455, 0
    %v484 = vsel %vm193, %v456, 0
    %486 = vmatprep.subr.bf16.mxu0 0
    %487 = vmatpush1.bf16.msra.mxu0 0
    %488 = vmatprep.subr.bf16.mxu0 0
    %489 = vmatpush1.bf16.msra.mxu0 0
    %490 = vmatprep.subr.bf16.mxu0 0
    %491 = vmatpush1.bf16.msra.mxu0 0
    %492 = vmatprep.subr.bf16.mxu0 0
    %493 = vmatpush1.bf16.msra.mxu0 0
    %494 = vmatprep.subr.bf16.mxu0 0
    %495 = vmatpush1.bf16.msra.mxu0 0
    %496 = vmatprep.subr.bf16.mxu0 0
    %497 = vmatpush1.bf16.msra.mxu0 0
    %498 = vmatprep.subr.bf16.mxu0 0
    %499 = vmatpush1.bf16.msra.mxu0 %v477
    %500 = vmatprep.subr.bf16.mxu0 0
    %501 = vmatpush1.bf16.msra.mxu0 %v476
    %502 = vmatprep.subr.bf16.mxu0 0
    %503 = vmatpush2.bf16.msra.mxu0 0
    %504 = vmatprep.subr.bf16.mxu0 0
    %505 = vmatpush2.bf16.msra.mxu0 0
    %506 = vmatprep.subr.bf16.mxu0 0
    %507 = vmatpush2.bf16.msra.mxu0 0
    %508 = vmatprep.subr.bf16.mxu0 0
    %509 = vmatpush2.bf16.msra.mxu0 0
    %510 = vmatprep.subr.bf16.mxu0 0
    %511 = vmatpush2.bf16.msra.mxu0 0
    %512 = vmatprep.subr.bf16.mxu0 0
    %513 = vmatpush2.bf16.msra.mxu0 0
    %514 = vmatprep.subr.bf16.mxu0 0
    %515 = vmatpush2.bf16.msra.mxu0 0
    %516 = vmatprep.subr.bf16.mxu0 0
    %517 = vmatpush2.bf16.msra.mxu0 0
    %518 = vmatprep.mubr.bf16.mxu0 0
    %519 = vmatmul.mubr.bf16.gmra.mxu0 %v481
    %v520 = vpop.f32.mrf.mxu0
    %v521 = vadd.f32 %v466, %v520
    %v522 = vpop.f32.mrf.mxu0
    %v523 = vpop.f32.mrf.mxu0
    %v524 = vadd.f32 %v466, %v523
    %v525 = vpop.f32.mrf.mxu0
    %526 = vmatprep.mubr.bf16.mxu0 0
    %527 = vmatmul.mubr.bf16.gmra.mxu0 %v484
    %v528 = vpop.f32.mrf.mxu0
    %v529 = vadd.f32 %v466, %v528
    %v530 = vpop.f32.mrf.mxu0
    %v531 = vpop.f32.mrf.mxu0
    %v532 = vadd.f32 %v466, %v531
    %v533 = vpop.f32.mrf.mxu0
    %534 = vdwg.mxu0
    %535 = vst.msk [vmem:[#allocation7] sm:$0xff] %vm193, %v521
    %536 = vst.msk [vmem:[#allocation7 + $0x8] sm:$0xff] %vm193, %v524
    %537 = vst.msk [vmem:[#allocation7 + $0x10] sm:$0xff] %vm193, %v529
    %538 = vst.msk [vmem:[#allocation7 + $0x18] sm:$0xff] %vm193, %v532
    // Predicated region
    $region46: #{tpu_custom_call.1} parent=1 // pred_check
      _
    $region47: #{tpu_custom_call.1} parent=1 // pred_check_branch
      %540 = sbr.rel (0) target = $region49
    $region48: #{tpu_custom_call.1} parent=1 // pred_region
      %s542 = ssub.s32 512, 512
      %543 = vsyncadd [#allocation4], %s542
      %s544 = sshll.u32 [#allocation7], 4
      %s545 = int_to_ptr.vmem [resolvable:$true] %s544
      %550 = dma.vmem_to_hbm [thread:$0]  %s545, 512, %s9, [#allocation4], 128, 128, 8
    $region49: #{tpu_custom_call.1} parent=1 // pred_fallthru
      _
    // Predicated region
    $region50: #{tpu_custom_call.1} parent=1 // pred_check
      _
    $region51: #{tpu_custom_call.1} parent=1 // pred_check_branch
      %552 = sbr.rel (0) target = $region53
    $region52: #{tpu_custom_call.1} parent=1 // pred_region
      %553 = dma.done [#allocation4], 512
    $region53: #{tpu_custom_call.1} parent=1 // pred_fallthru
      _
    %554 = vsyncpa [#allocation3], 1
    %555 = vsyncpa [#allocation6], 1
    %556 = vsyncpa [#allocation4], 1

</llo_original>
